<compile_context>
chip_gen: v5e
topology: v5e:2x2
jax: 0.10.0
libtpu: 0.0.40
codegen_flags: <defaults>
</compile_context>

<pallas_src>
import jax
import jax.numpy as jnp
from jax.experimental import pallas as pl
from jax.experimental.pallas import tpu as pltpu

EPS = 1e-5                       # PyTorch BatchNorm2d default eps
_VMEM_LIMIT = 48 * 1024 * 1024   # above v5e/v6e scoped defaults, below v7x 64 MiB


def _pick_spatial_tile(S, Cp, budget_bytes=40 * 1024 * 1024):
    """Largest lane tile (multiple of 128 dividing S) keeping kernel-2 VMEM
    (double-buffered x and y tiles + resident (Cp, Cp) w2) under budget."""
    if S % 128 != 0:
        return S  # full-extent block is always legal; only hit at toy shapes
    best = 128
    for t in (256, 512, 1024, 2048):
        if S % t == 0 and (4 * Cp * t * 4 + Cp * Cp * 4) <= budget_bytes:
            best = t
    return best


def _attn_ctx_kernel(x_ref, wk_ref, ctx_ref, m_sc, l_sc, acc_sc):
    """Online-softmax global context, one batch element, tiled over S.

    x_ref: (1, Cp, tS)  wk_ref: (1, Cp)  ctx_ref: (1, Cp, 1)
    scratch: m_sc/l_sc (1, 1) f32, acc_sc (Cp, 1) f32
    """
    k = pl.program_id(1)

    @pl.when(k == 0)
    def _():
        m_sc[...] = jnp.full_like(m_sc, -jnp.inf)
        l_sc[...] = jnp.zeros_like(l_sc)
        acc_sc[...] = jnp.zeros_like(acc_sc)

    x = x_ref[0]                                                      # (Cp, tS)
    # wk 1x1 conv logits; bias omitted: a constant shift cancels under softmax.
    s = jnp.dot(wk_ref[...], x, preferred_element_type=jnp.float32)   # (1, tS)

    m_new = jnp.maximum(m_sc[...], jnp.max(s, axis=1, keepdims=True))  # (1, 1)
    alpha = jnp.exp(m_sc[...] - m_new)
    e = jnp.exp(s - m_new)                                             # (1, tS)
    l_sc[...] = alpha * l_sc[...] + jnp.sum(e, axis=1, keepdims=True)
    acc_sc[...] = alpha * acc_sc[...] + jnp.sum(x * e, axis=1, keepdims=True)
    m_sc[...] = m_new

    @pl.when(k == pl.num_programs(1) - 1)
    def _():
        # One (Cp,1) scale instead of normalizing an S-wide probability vector.
        ctx_ref[0] = acc_sc[...] / l_sc[...]


def _conv_stats_kernel(x_ref, ctx_ref, w2_ref, b2_ref, y_ref, sum_ref, sq_ref):
    """react2 1x1 conv + per-(batch, channel) BN partial sums.

    x_ref: (1, Cp, tS)  ctx_ref: (1, Cp, 1)  w2_ref: (Cp, Cp)  b2_ref: (Cp, 1)
    y_ref: (1, Cp, tS)  sum_ref/sq_ref: (1, Cp, 1)  (resident across the S axis)
    """
    k = pl.program_id(1)

    @pl.when(k == 0)
    def _():
        sum_ref[...] = jnp.zeros_like(sum_ref)
        sq_ref[...] = jnp.zeros_like(sq_ref)

    a = x_ref[0] + ctx_ref[0]                                          # (Cp, tS)
    y = jnp.dot(w2_ref[...], a, preferred_element_type=jnp.float32) + b2_ref[...]
    y_ref[0] = y
    sum_ref[0] = sum_ref[0] + jnp.sum(y, axis=1, keepdims=True)
    sq_ref[0] = sq_ref[0] + jnp.sum(y * y, axis=1, keepdims=True)


def _bn_apply_kernel(y_ref, scale_ref, shift_ref, o_ref):
    """Elementwise BN apply: o = y * scale + shift (per-channel folded affine)."""
    o_ref[0] = y_ref[0] * scale_ref[...] + shift_ref[...]


def global_attention(x, wk_w, wk_b, w2, b2, gamma, beta):
    """Attention (global context) + react2 1x1 conv + train-mode BatchNorm2d.

    x: (B, C, H, W); wk_w: (1, C); wk_b: (1, 1); w2: (C, C); b2/gamma/beta: (C, 1).
    """
    del wk_b  # constant added to every softmax logit -> mathematically a no-op
    B, C, H, W = x.shape
    S = H * W

    # Pad channels to the f32 sublane granule (8). Real CEANet channel counts are
    # already multiples of 8, so this only fires (and only then costs a pass) at
    # toy / unaligned shapes.
    Cp = ((C + 7) // 8) * 8
    x3 = x.reshape(B, C, S).astype(jnp.float32)
    if Cp != C:
        pc = Cp - C
        x3 = jnp.pad(x3, ((0, 0), (0, pc), (0, 0)))
        wk_w = jnp.pad(wk_w, ((0, 0), (0, pc)))
        w2 = jnp.pad(w2, ((0, pc), (0, pc)))
        b2 = jnp.pad(b2, ((0, pc), (0, 0)))
        gamma = jnp.pad(gamma, ((0, pc), (0, 0)), constant_values=1.0)
        beta = jnp.pad(beta, ((0, pc), (0, 0)))
    wk_w = wk_w.astype(jnp.float32)
    w2 = w2.astype(jnp.float32)
    b2 = b2.astype(jnp.float32)
    gamma = gamma.astype(jnp.float32)
    beta = beta.astype(jnp.float32)

    tS = _pick_spatial_tile(S, Cp)
    n_s = S // tS

    # ---- Kernel 1: global-context attention (online softmax over S tiles) ----
    ctx = pl.pallas_call(
        _attn_ctx_kernel,
        out_shape=jax.ShapeDtypeStruct((B, Cp, 1), jnp.float32),
        grid_spec=pltpu.PrefetchScalarGridSpec(
            num_scalar_prefetch=0,
            grid=(B, n_s),
            in_specs=[
                pl.BlockSpec((1, Cp, tS), lambda b, k: (b, 0, k)),
                pl.BlockSpec((1, Cp), lambda b, k: (0, 0)),
            ],
            out_specs=pl.BlockSpec((1, Cp, 1), lambda b, k: (b, 0, 0)),
            scratch_shapes=[
                pltpu.VMEM((1, 1), jnp.float32),
                pltpu.VMEM((1, 1), jnp.float32),
                pltpu.VMEM((Cp, 1), jnp.float32),
            ],
        ),
        compiler_params=pltpu.CompilerParams(
            dimension_semantics=("parallel", "arbitrary"),
            vmem_limit_bytes=_VMEM_LIMIT,
        ),
    )(x3, wk_w)

    # ---- Kernel 2: react2 1x1 conv + BN partial stats (same layout, no transpose) ----
    y, ysum, ysq = pl.pallas_call(
        _conv_stats_kernel,
        out_shape=(
            jax.ShapeDtypeStruct((B, Cp, S), jnp.float32),
            jax.ShapeDtypeStruct((B, Cp, 1), jnp.float32),
            jax.ShapeDtypeStruct((B, Cp, 1), jnp.float32),
        ),
        grid_spec=pltpu.PrefetchScalarGridSpec(
            num_scalar_prefetch=0,
            grid=(B, n_s),
            in_specs=[
                pl.BlockSpec((1, Cp, tS), lambda b, k: (b, 0, k)),
                pl.BlockSpec((1, Cp, 1), lambda b, k: (b, 0, 0)),
                pl.BlockSpec((Cp, Cp), lambda b, k: (0, 0)),
                pl.BlockSpec((Cp, 1), lambda b, k: (0, 0)),
            ],
            out_specs=(
                pl.BlockSpec((1, Cp, tS), lambda b, k: (b, 0, k)),
                pl.BlockSpec((1, Cp, 1), lambda b, k: (b, 0, 0)),
                pl.BlockSpec((1, Cp, 1), lambda b, k: (b, 0, 0)),
            ),
        ),
        compiler_params=pltpu.CompilerParams(
            dimension_semantics=("parallel", "arbitrary"),
            vmem_limit_bytes=_VMEM_LIMIT,
        ),
    )(x3, ctx, w2, b2)

    # Fold batch stats into a per-channel affine (tiny (B, Cp, 1) tensors -> negligible).
    n = jnp.float32(B * S)
    mean = jnp.sum(ysum, axis=0) / n                                     # (Cp, 1)
    var = jnp.maximum(jnp.sum(ysq, axis=0) / n - mean * mean, 0.0)       # biased (train mode)
    inv = jax.lax.rsqrt(var + EPS)
    scale = gamma * inv                                                  # (Cp, 1)
    shift = beta - mean * scale                                          # (Cp, 1)

    # ---- Kernel 3: elementwise BN apply (fully parallel, tiled) ----
    out = pl.pallas_call(
        _bn_apply_kernel,
        out_shape=jax.ShapeDtypeStruct((B, Cp, S), jnp.float32),
        grid_spec=pltpu.PrefetchScalarGridSpec(
            num_scalar_prefetch=0,
            grid=(B, n_s),
            in_specs=[
                pl.BlockSpec((1, Cp, tS), lambda b, k: (b, 0, k)),
                pl.BlockSpec((Cp, 1), lambda b, k: (0, 0)),
                pl.BlockSpec((Cp, 1), lambda b, k: (0, 0)),
            ],
            out_specs=pl.BlockSpec((1, Cp, tS), lambda b, k: (b, 0, k)),
        ),
        compiler_params=pltpu.CompilerParams(
            dimension_semantics=("parallel", "parallel"),
            vmem_limit_bytes=_VMEM_LIMIT,
        ),
    )(y, scale, shift)

    if Cp != C:
        out = out[:, :C, :]  # only at unaligned toy shapes; production C is a multiple of 8
    return out.reshape(B, C, H, W)  # metadata-only reshape; no transposes anywhere


def _reference(x, wk_w, wk_b, w2, b2, gamma, beta):
    """Pure-JAX mirror of the PyTorch forward (training-mode BN, bias kept)."""
    B, C, H, W = x.shape
    S = H * W
    x3 = x.reshape(B, C, S)
    s = jnp.einsum("c,bcs->bs", wk_w[0], x3) + wk_b[0, 0]            # (B, S)
    p = jax.nn.softmax(s, axis=1)
    ctx = jnp.einsum("bcs,bs->bc", x3, p)                            # (B, C)
    a = x + ctx[:, :, None, None]
    y = jnp.einsum("oi,bihw->bohw", w2, a) + b2[:, 0][None, :, None, None]
    mean = y.mean(axis=(0, 2, 3), keepdims=True)
    var = jnp.square(y - mean).mean(axis=(0, 2, 3), keepdims=True)
    g = gamma[:, 0][None, :, None, None]
    bt = beta[:, 0][None, :, None, None]
    return g * (y - mean) / jnp.sqrt(var + EPS) + bt


if __name__ == "__main__":
    B, C, H, W = 2, 4, 16, 16

    key = jax.random.PRNGKey(0)
    ks = jax.random.split(key, 7)
    # Deterministic synthetic parameters (shapes follow the module's layers).
    wk_w = (jax.random.normal(ks[0], (1, C)) * 0.2).astype(jnp.float32)   # wk: Conv2d(C,1,1)
    wk_b = (jax.random.normal(ks[1], (1, 1)) * 0.1).astype(jnp.float32)
    w2 = (jax.random.normal(ks[2], (C, C)) * 0.2).astype(jnp.float32)     # react2: Conv2d(C,C,1)
    b2 = (jax.random.normal(ks[3], (C, 1)) * 0.1).astype(jnp.float32)
    gamma = (1.0 + 0.1 * jax.random.normal(ks[4], (C, 1))).astype(jnp.float32)  # BN affine
    beta = (0.1 * jax.random.normal(ks[5], (C, 1))).astype(jnp.float32)
    x = jax.random.normal(ks[6], (B, C, H, W), dtype=jnp.float32)

    out = global_attention(x, wk_w, wk_b, w2, b2, gamma, beta)
    out = jax.block_until_ready(out)

    ref = _reference(x, wk_w, wk_b, w2, b2, gamma, beta)
    assert out.shape == (B, C, H, W)
    assert jnp.allclose(out, ref, atol=1e-4, rtol=1e-4), float(jnp.abs(out - ref).max())

    print("KERNEL_OK")
</pallas_src>

<mosaic_0001>
module attributes {stable_mosaic.version = 11 : i64} {
  func.func @_attn_ctx_kernel(%arg0: i32, %arg1: i32, %arg2: memref<1x8x256xf32, #tpu.memory_space<vmem>>, %arg3: memref<1x8xf32, #tpu.memory_space<vmem>>, %arg4: memref<1x8x1xf32, #tpu.memory_space<vmem>>, %arg5: memref<1x1xf32, #tpu.memory_space<vmem>>, %arg6: memref<1x1xf32, #tpu.memory_space<vmem>>, %arg7: memref<8x1xf32, #tpu.memory_space<vmem>>) attributes {dimension_semantics = [#tpu.dimension_semantics<parallel>, #tpu.dimension_semantics<arbitrary>], iteration_bounds = array<i64: 2, 1>, scalar_prefetch = 0 : i64, scratch_operands = 3 : i64, tpu.core_type = #tpu.core_type<tc>, window_params = [{transform_indices = @transform_0, window_bounds = array<i64: 1, 8, 256>}, {pipeline_mode = #tpu.pipeline_mode<synchronous>, transform_indices = @transform_1, window_bounds = array<i64: 1, 8>}, {transform_indices = @transform_2, window_bounds = array<i64: 1, 8, 1>}]} {
    %c0_i32 = arith.constant 0 : i32
    %0 = arith.cmpi eq, %arg1, %c0_i32 : i32
    %1 = arith.extui %0 : i1 to i32
    %c0_i32_0 = arith.constant 0 : i32
    %2 = arith.cmpi ne, %1, %c0_i32_0 : i32
    scf.if %2 {
      %cst_24 = arith.constant 0xFF800000 : f32
      %36 = vector.broadcast %cst_24 : f32 to vector<1x1xf32>
      %c0_25 = arith.constant 0 : index
      %c0_26 = arith.constant 0 : index
      %37 = vector.load %arg5[%c0_25, %c0_26] : memref<1x1xf32, #tpu.memory_space<vmem>>, vector<1x1xf32>
      tpu.vector_store %arg5[%c0_25, %c0_26], %36 {strides = array<i32>} : memref<1x1xf32, #tpu.memory_space<vmem>>, vector<1x1xf32>,
      %cst_27 = arith.constant 0.000000e+00 : f32
      %38 = vector.broadcast %cst_27 : f32 to vector<1x1xf32>
      %c0_28 = arith.constant 0 : index
      %c0_29 = arith.constant 0 : index
      %39 = vector.load %arg6[%c0_28, %c0_29] : memref<1x1xf32, #tpu.memory_space<vmem>>, vector<1x1xf32>
      tpu.vector_store %arg6[%c0_28, %c0_29], %38 {strides = array<i32>} : memref<1x1xf32, #tpu.memory_space<vmem>>, vector<1x1xf32>,
      %cst_30 = arith.constant 0.000000e+00 : f32
      %40 = vector.broadcast %cst_30 : f32 to vector<8x1xf32>
      %c0_31 = arith.constant 0 : index
      %c0_32 = arith.constant 0 : index
      %41 = vector.load %arg7[%c0_31, %c0_32] : memref<8x1xf32, #tpu.memory_space<vmem>>, vector<8x1xf32>
      tpu.vector_store %arg7[%c0_31, %c0_32], %40 {strides = array<i32>} : memref<8x1xf32, #tpu.memory_space<vmem>>, vector<8x1xf32>,
    } else {
    }
    %c0 = arith.constant 0 : index
    %c0_1 = arith.constant 0 : index
    %c0_2 = arith.constant 0 : index
    %3 = vector.load %arg2[%c0, %c0_1, %c0_2] : memref<1x8x256xf32, #tpu.memory_space<vmem>>, vector<1x8x256xf32>
    %4 = vector.shape_cast %3 : vector<1x8x256xf32> to vector<8x256xf32>
    %c0_3 = arith.constant 0 : index
    %c0_4 = arith.constant 0 : index
    %5 = vector.load %arg3[%c0_3, %c0_4] : memref<1x8xf32, #tpu.memory_space<vmem>>, vector<1x8xf32>
    %cst = arith.constant dense<0.000000e+00> : vector<1x256xf32>
    %6 = tpu.matmul %5, %4, %cst {dimension_numbers = #tpu.dot_dimension_numbers<[1], [0], [0], [1], [0, 0, 1, 1], [], []>} : vector<1x8xf32>, vector<8x256xf32>, vector<1x256xf32> -> vector<1x256xf32>
    %c0_5 = arith.constant 0 : index
    %c0_6 = arith.constant 0 : index
    %7 = vector.load %arg5[%c0_5, %c0_6] : memref<1x1xf32, #tpu.memory_space<vmem>>, vector<1x1xf32>
    %cst_7 = arith.constant dense<0xFF800000> : vector<1xf32>
    %8 = vector.multi_reduction <maximumf>, %6, %cst_7 [1] : vector<1x256xf32> to vector<1xf32>
    %9 = vector.shape_cast %8 : vector<1xf32> to vector<1x1xf32>
    %10 = arith.maximumf %7, %9 : vector<1x1xf32>
    %c0_8 = arith.constant 0 : index
    %c0_9 = arith.constant 0 : index
    %11 = vector.load %arg5[%c0_8, %c0_9] : memref<1x1xf32, #tpu.memory_space<vmem>>, vector<1x1xf32>
    %12 = arith.subf %11, %10 : vector<1x1xf32>
    %13 = math.exp %12 : vector<1x1xf32>
    %14 = vector.broadcast %10 : vector<1x1xf32> to vector<1x256xf32>
    %15 = arith.subf %6, %14 : vector<1x256xf32>
    %16 = math.exp %15 : vector<1x256xf32>
    %c0_10 = arith.constant 0 : index
    %c0_11 = arith.constant 0 : index
    %17 = vector.load %arg6[%c0_10, %c0_11] : memref<1x1xf32, #tpu.memory_space<vmem>>, vector<1x1xf32>
    %18 = arith.mulf %13, %17 : vector<1x1xf32>
    %cst_12 = arith.constant dense<0.000000e+00> : vector<1xf32>
    %19 = vector.multi_reduction <add>, %16, %cst_12 [1] : vector<1x256xf32> to vector<1xf32>
    %20 = vector.shape_cast %19 : vector<1xf32> to vector<1x1xf32>
    %21 = arith.addf %18, %20 : vector<1x1xf32>
    %c0_13 = arith.constant 0 : index
    %c0_14 = arith.constant 0 : index
    %22 = vector.load %arg6[%c0_13, %c0_14] : memref<1x1xf32, #tpu.memory_space<vmem>>, vector<1x1xf32>
    tpu.vector_store %arg6[%c0_13, %c0_14], %21 {strides = array<i32>} : memref<1x1xf32, #tpu.memory_space<vmem>>, vector<1x1xf32>,
    %c0_15 = arith.constant 0 : index
    %c0_16 = arith.constant 0 : index
    %23 = vector.load %arg7[%c0_15, %c0_16] : memref<8x1xf32, #tpu.memory_space<vmem>>, vector<8x1xf32>
    %24 = vector.broadcast %13 : vector<1x1xf32> to vector<8x1xf32>
    %25 = arith.mulf %24, %23 : vector<8x1xf32>
    %26 = vector.broadcast %16 : vector<1x256xf32> to vector<8x256xf32>
    %27 = arith.mulf %4, %26 : vector<8x256xf32>
    %cst_17 = arith.constant dense<0.000000e+00> : vector<8xf32>
    %28 = vector.multi_reduction <add>, %27, %cst_17 [1] : vector<8x256xf32> to vector<8xf32>
    %29 = vector.shape_cast %28 : vector<8xf32> to vector<8x1xf32>
    %30 = arith.addf %25, %29 : vector<8x1xf32>
    %c0_18 = arith.constant 0 : index
    %c0_19 = arith.constant 0 : index
    %31 = vector.load %arg7[%c0_18, %c0_19] : memref<8x1xf32, #tpu.memory_space<vmem>>, vector<8x1xf32>
    tpu.vector_store %arg7[%c0_18, %c0_19], %30 {strides = array<i32>} : memref<8x1xf32, #tpu.memory_space<vmem>>, vector<8x1xf32>,
    %c0_20 = arith.constant 0 : index
    %c0_21 = arith.constant 0 : index
    %32 = vector.load %arg5[%c0_20, %c0_21] : memref<1x1xf32, #tpu.memory_space<vmem>>, vector<1x1xf32>
    tpu.vector_store %arg5[%c0_20, %c0_21], %10 {strides = array<i32>} : memref<1x1xf32, #tpu.memory_space<vmem>>, vector<1x1xf32>,
    %c0_i32_22 = arith.constant 0 : i32
    %33 = arith.cmpi eq, %arg1, %c0_i32_22 : i32
    %34 = arith.extui %33 : i1 to i32
    %c0_i32_23 = arith.constant 0 : i32
    %35 = arith.cmpi ne, %34, %c0_i32_23 : i32
    scf.if %35 {
      %c0_24 = arith.constant 0 : index
      %c0_25 = arith.constant 0 : index
      %36 = vector.load %arg7[%c0_24, %c0_25] : memref<8x1xf32, #tpu.memory_space<vmem>>, vector<8x1xf32>
      %c0_26 = arith.constant 0 : index
      %c0_27 = arith.constant 0 : index
      %37 = vector.load %arg6[%c0_26, %c0_27] : memref<1x1xf32, #tpu.memory_space<vmem>>, vector<1x1xf32>
      %38 = vector.broadcast %37 : vector<1x1xf32> to vector<8x1xf32>
      %39 = arith.divf %36, %38 : vector<8x1xf32>
      %c0_28 = arith.constant 0 : index
      %c0_29 = arith.constant 0 : index
      %c0_30 = arith.constant 0 : index
      %40 = vector.load %arg4[%c0_28, %c0_29, %c0_30] : memref<1x8x1xf32, #tpu.memory_space<vmem>>, vector<1x8x1xf32>
      %41 = vector.shape_cast %40 : vector<1x8x1xf32> to vector<8x1xf32>
      %42 = vector.shape_cast %39 : vector<8x1xf32> to vector<1x8x1xf32>
      tpu.vector_store %arg4[%c0_28, %c0_29, %c0_30], %42 {strides = array<i32>} : memref<1x8x1xf32, #tpu.memory_space<vmem>>, vector<1x8x1xf32>,
    } else {
    }
    return
  }
  func.func @transform_0(%arg0: i32, %arg1: i32) -> (i32, i32, i32) {
    %c0_i32 = arith.constant 0 : i32
    %c0_i32_0 = arith.constant 0 : i32
    return %arg0, %c0_i32, %arg1 : i32, i32, i32
  }
  func.func @transform_1(%arg0: i32, %arg1: i32) -> (i32, i32) {
    %c0_i32 = arith.constant 0 : i32
    %c0_i32_0 = arith.constant 0 : i32
    %c0_i32_1 = arith.constant 0 : i32
    return %c0_i32, %c0_i32_0 : i32, i32
  }
  func.func @transform_2(%arg0: i32, %arg1: i32) -> (i32, i32, i32) {
    %c0_i32 = arith.constant 0 : i32
    %c0_i32_0 = arith.constant 0 : i32
    %c0_i32_1 = arith.constant 0 : i32
    return %arg0, %c0_i32, %c0_i32_0 : i32, i32, i32
  }
}

</mosaic_0001>

<llo_original>
// kernel: tpu_custom_call.1
$region0: #{tpu_custom_call.1}
  #allocation0 [shape = 'u32[]', space=smem, size = 0x4, offset = 0x4, fixed_abs, tag = 'smem constant byte address 0x4 - core index']
  #allocation1 [shape = 'u32[72,128]{1,0:T(1,128)}', space=vmem, size = 0x9000, scoped, tag = 'internal scratch']
  #allocation2 [shape = 'f32[1,1]{1,0:T(1,128)}', space=vmem, size = 0x200, scoped, tag = 'scratch operand']
  #allocation3 [shape = 'f32[1,1]{1,0:T(1,128)}', space=vmem, size = 0x200, scoped, tag = 'scratch operand']
  #allocation4 [shape = 'f32[8,1]{1,0:T(8,128)}', space=vmem, size = 0x1000, scoped, tag = 'scratch operand']
  %s0 = inlined_call_operand.hbm [shape: f32[2,8,256], index: 0, kind: input, shape index: {}]
  %s1 = inlined_call_operand.hbm [shape: f32[1,8], index: 1, kind: input, shape index: {}]
  %s2 = inlined_call_operand.vmem [shape: f32[2,8,1], index: 2, kind: output, shape index: {}]
  %s3 = sld [smem:[#allocation0]]
  $region57: #{tpu_custom_call.1} parent=0
    _
  %s5 = ssub.s32 1, %s3
  %s6 = scalar_select 0, %s5, %s3
  $region1: #{tpu_custom_call.1} parent=0
    #allocation5 [shape = 'u8[16384]{0}', space=vmem, size = 0x4000, scoped, tag = 'input window, operand 0']
    #allocation6 [shape = 's32[2]{0}', space=sflag, size = 0x8, scoped, tag = 'scoped memory for tpu_custom_call.1']
    #allocation7 [shape = 'u8[512]{0}', space=vmem, size = 0x400, scoped, tag = 'input window, operand 1, single buffered']
    #allocation8 [shape = 's32[1]{0}', space=sflag, size = 0x4, scoped, tag = 'scoped memory for tpu_custom_call.1']
    %7 = vsyncpa [#allocation6], 0
    %s8 = scalar_lea.sflag [#allocation6], 1
    %9 = vsyncpa %s8, 0
    %10 = vsyncpa [#allocation8], 0
    loop: start=0, step=1, limit=4
    $region2: #{tpu_custom_call.1} parent=1 // loop_pre_header
      _
    $region3: #{tpu_custom_call.1} parent=1 // loop_header
      %s12 = sphi 0, %s16
      %p13 = scmp.ge.s32.totalorder %s12, 4
      %s19 = sphi 0, %s31
      %s20 = sphi 0, %s27
      %s21 = sphi 0, %s19
      %s22 = sphi 0, %s20
      %s23 = sphi 0, %s21
      %s24 = sphi 0, %s22
      %s36 = sphi 0, %s38
      %s39 = sphi 0, %s36
      %s40 = sphi 0, %s39
      %s56 = sphi 0, %s40
      %s60 = sphi 0, %s60
      %s62 = sphi 0, %s60
      %s63 = sphi 0, %s62
      %s77 = sphi 0, %s63
      %s83 = sphi 0, %s85
      %s86 = sphi 0, %s83
      %s87 = sphi 0, %s86
      %s103 = sphi 0, %s87
    $region4: #{tpu_custom_call.1} parent=1 // loop_header_branch
      %15 = sbr.rel (%p13) target = $region8
    $region5: #{tpu_custom_call.1} parent=1 // loop_body
      %s17 = ssub.s32 %s12, 1
      %s18 = ssub.s32 %s12, 2
      %s25 = sadd.s32 1, %s20
      %p26 = scmp.ge.s32.totalorder %s25, 1
      %s27 = scalar_select %p26, 0, %s25
      %s28 = sadd.s32 1, %s19
      %s29 = scalar_select %p26, %s28, %s19
      %p30 = scmp.ge.s32.totalorder %s29, 2
      %s31 = scalar_select %p30, 0, %s29
      %s32 = ssub.s32 %s19, %s31
      %s33 = ssub.s32 %s20, %s27
      %s34 = sor.u32 %s32, %s33
      %p35 = scmp.eq.s32.totalorder %s34, 0
      %s37 = sadd.s32 %s36, 1
      %s38 = scalar_select %p35, %s36, %s37
      %p41 = pneg %p35
      %p42 = scmp.eq.s32.totalorder %s12, 1
      %p43 = por %p41, %p42
      %p44 = scmp.ne.s32.totalorder %s36, %s39
      %p45 = scmp.eq.s32.totalorder %s12, 0
      %p46 = por %p44, %p45
      %p47 = scmp.ne.s32.totalorder %s36, %s39
      %p48 = scmp.eq.s32.totalorder %s17, 1
      %p49 = por %p47, %p48
      %p50 = scmp.ne.s32.totalorder %s39, %s40
      %p51 = scmp.eq.s32.totalorder %s17, 0
      %p52 = por %p50, %p51
      %p53 = scmp.ne.s32.totalorder %s39, %s40
      %p54 = scmp.eq.s32.totalorder %s18, 1
      %p55 = por %p53, %p54
      %p57 = scmp.ne.s32.totalorder %s40, %s56
      %p58 = scmp.eq.s32.totalorder %s18, 0
      %p59 = por %p57, %p58
      %s61 = sadd.s32 %s60, 1
      %p64 = scmp.eq.s32.totalorder %s12, 1
      %p65 = scmp.ne.s32.totalorder %s60, %s62
      %p66 = scmp.eq.s32.totalorder %s12, 0
      %p67 = por %p65, %p66
      %p68 = scmp.ne.s32.totalorder %s60, %s62
      %p69 = scmp.eq.s32.totalorder %s17, 1
      %p70 = por %p68, %p69
      %p71 = scmp.ne.s32.totalorder %s62, %s63
      %p72 = scmp.eq.s32.totalorder %s17, 0
      %p73 = por %p71, %p72
      %p74 = scmp.ne.s32.totalorder %s62, %s63
      %p75 = scmp.eq.s32.totalorder %s18, 1
      %p76 = por %p74, %p75
      %p78 = scmp.ne.s32.totalorder %s63, %s77
      %p79 = scmp.eq.s32.totalorder %s18, 0
      %p80 = por %p78, %p79
      %s81 = ssub.s32 %s19, %s31
      %p82 = scmp.eq.s32.totalorder %s81, 0
      %s84 = sadd.s32 %s83, 1
      %s85 = scalar_select %p82, %s83, %s84
      %p88 = pneg %p82
      %p89 = scmp.eq.s32.totalorder %s12, 1
      %p90 = por %p88, %p89
      %p91 = scmp.ne.s32.totalorder %s83, %s86
      %p92 = scmp.eq.s32.totalorder %s12, 0
      %p93 = por %p91, %p92
      %p94 = scmp.ne.s32.totalorder %s83, %s86
      %p95 = scmp.eq.s32.totalorder %s17, 1
      %p96 = por %p94, %p95
      %p97 = scmp.ne.s32.totalorder %s86, %s87
      %p98 = scmp.eq.s32.totalorder %s17, 0
      %p99 = por %p97, %p98
      %p100 = scmp.ne.s32.totalorder %s86, %s87
      %p101 = scmp.eq.s32.totalorder %s18, 1
      %p102 = por %p100, %p101
      %p104 = scmp.ne.s32.totalorder %s87, %s103
      %p105 = scmp.eq.s32.totalorder %s18, 0
      %p106 = por %p104, %p105
      %p107 = scmp.le.s32.totalorder 1, %s12
      %p108 = scmp.lt.s32.totalorder %s12, 3
      %p109 = pnand %p107, %p108
      %p110 = pneg %p109
      // Predicated region
      $region9: #{tpu_custom_call.1} parent=5 // pred_check
        _
      $region10: #{tpu_custom_call.1} parent=5 // pred_check_branch
        %112 = sbr.rel (%p109) target = $region12
      $region11: #{tpu_custom_call.1} parent=5 // pred_region
        %s113 = ssub.s32 %s12, 1
        // Predicated region
        $region13: #{tpu_custom_call.1} parent=11 // pred_check
          %p114 = pneg %p73
        $region14: #{tpu_custom_call.1} parent=11 // pred_check_branch
          %116 = sbr.rel (%p114) target = $region16
        $region15: #{tpu_custom_call.1} parent=11 // pred_region
          %118 = vsyncadd [#allocation8], 0
          %s120 = sshll.u32 %s1, 4
          %s121 = int_to_ptr.hbm [resolvable:$true] %s120
          %s122 = sshll.u32 [#allocation7], 4
          %s123 = int_to_ptr.vmem [resolvable:$true] %s122
          %125 = dma.hbm_to_vmem [thread:$0]  %s121, 16, %s123, [#allocation8]
        $region16: #{tpu_custom_call.1} parent=11 // pred_fallthru
          _
      $region12: #{tpu_custom_call.1} parent=5 // pred_fallthru
        _
      %p126 = scmp.lt.s32.totalorder %s12, 2
      // Predicated region
      $region17: #{tpu_custom_call.1} parent=5 // pred_check
        %p127 = pneg %p126
      $region18: #{tpu_custom_call.1} parent=5 // pred_check_branch
        %129 = sbr.rel (%p127) target = $region20
      $region19: #{tpu_custom_call.1} parent=5 // pred_region
        // Predicated region
        $region21: #{tpu_custom_call.1} parent=19 // pred_check
          %p130 = pneg %p46
        $region22: #{tpu_custom_call.1} parent=19 // pred_check_branch
          %132 = sbr.rel (%p130) target = $region24
        $region23: #{tpu_custom_call.1} parent=19 // pred_region
          %s133 = sand.u32 %s36, 1
          %s134 = scalar_lea.sflag [#allocation6], %s133
          %s135 = sand.u32 %s36, 1
          %s136 = smul.addr %s135, 16
          %s137 = scalar_lea.vmem [#allocation5], %s136
          %s138 = smul.u32 2, %s20
          %140 = vsyncadd %s134, 0
          %s141 = smul.addr %s19, 2
          %s142 = sadd.s32 %s138, %s141
          %s143 = smul.addr %s142, 8
          %s144 = scalar_lea.hbm %s0, %s143
          %s146 = sshll.u32 %s144, 4
          %s147 = int_to_ptr.hbm [resolvable:$true] %s146
          %s148 = sshll.u32 %s137, 4
          %s149 = int_to_ptr.vmem [resolvable:$true] %s148
          %151 = dma.hbm_to_vmem [thread:$0]  %s147, 256, %s149, %s134
        $region24: #{tpu_custom_call.1} parent=19 // pred_fallthru
          _
      $region20: #{tpu_custom_call.1} parent=5 // pred_fallthru
        _
      %p152 = scmp.le.s32.totalorder 1, %s12
      %p153 = scmp.lt.s32.totalorder %s12, 3
      %p154 = pnand %p152, %p153
      %p155 = pneg %p154
      // Predicated region
      $region25: #{tpu_custom_call.1} parent=5 // pred_check
        _
      $region26: #{tpu_custom_call.1} parent=5 // pred_check_branch
        %157 = sbr.rel (%p154) target = $region28
      $region27: #{tpu_custom_call.1} parent=5 // pred_region
        %s158 = ssub.s32 %s12, 1
        %s159 = sand.u32 %s39, 1
        %s160 = scalar_lea.sflag [#allocation6], %s159
        %s161 = sand.u32 %s39, 1
        %s162 = smul.addr %s161, 16
        %s163 = scalar_lea.vmem [#allocation5], %s162
        // Predicated region
        $region29: #{tpu_custom_call.1} parent=27 // pred_check
          %p164 = pneg %p52
        $region30: #{tpu_custom_call.1} parent=27 // pred_check_branch
          %166 = sbr.rel (%p164) target = $region32
        $region31: #{tpu_custom_call.1} parent=27 // pred_region
          %168 = dma.done %s160, 256
        $region32: #{tpu_custom_call.1} parent=27 // pred_fallthru
          _
        // Predicated region
        $region33: #{tpu_custom_call.1} parent=27 // pred_check
          %p169 = pneg %p73
        $region34: #{tpu_custom_call.1} parent=27 // pred_check_branch
          %171 = sbr.rel (%p169) target = $region36
        $region35: #{tpu_custom_call.1} parent=27 // pred_region
          %173 = dma.done [#allocation8], 16
        $region36: #{tpu_custom_call.1} parent=27 // pred_fallthru
          _
        %s174 = sand.u32 %s39, 1
        %s175 = scalar_lea.sflag [#allocation6], %s174
        %s176 = sand.u32 %s39, 1
        %s177 = smul.addr %s176, 16
        %s178 = scalar_lea.vmem [#allocation5], %s177
        %p179 = pneg %p52
        %p180 = pneg %p49
        %p181 = pneg %p73
        %p182 = pneg %p70
        %p183 = pneg %p99
        %p184 = pneg %p96
        %p185 = scmp.lt.s32.totalorder %s21, 1
        %s186 = scalar_select %p185, %s21, 1
        %s187 = smul.addr %s186, 8
        %s188 = scalar_lea.vmem %s2, %s187
        %s189 = smul.u32 2, %s22
        %p190 = scmp.lt.s32.totalorder %s21, 1
        %s191 = scalar_select %p190, %s21, 1
        %s192 = smul.addr %s191, 8
        %s193 = scalar_lea.vmem %s2, %s192
        %p194 = scmp.eq.s32.totalorder %s22, 0
        // Predicated region
        $region37: #{tpu_custom_call.1} parent=27 // pred_check
          %p195 = pneg %p194
        $region38: #{tpu_custom_call.1} parent=27 // pred_check_branch
          %197 = sbr.rel (%p195) target = $region40
        $region39: #{tpu_custom_call.1} parent=27 // pred_region
          %vm198 = vcmask 0
          %199 = vst.msk [vmem:[#allocation2] sm:$0x1] %vm198, -inf
          %200 = vst.msk [vmem:[#allocation3] sm:$0x1] %vm198, 0.0
          %vm201 = vcmask 7168
          %202 = vst.msk [vmem:[#allocation4] sm:$0xff] %vm201, 0.0
        $region40: #{tpu_custom_call.1} parent=27 // pred_fallthru
          _
        %v203 = vld [vmem:[%s163] sm:$0xff]
        %v204 = vld [vmem:[%s163 + $0x8] sm:$0xff]
        %v205 = vld [vmem:[#allocation7] sm:$0x1]
        %vm206 = vcmask 64512
        %v208 = vsel %vm206, %v205, 0
        %210 = vmatpush.msra.mxu0 0.0
        %211 = vmatpush.msra.mxu0 0.0
        %212 = vmatpush.msra.mxu0 0.0
        %213 = vmatpush.msra.mxu0 0.0
        %214 = vmatpush.msra.mxu0 0.0
        %215 = vmatpush.msra.mxu0 0.0
        %216 = vmatpush.msra.mxu0 0.0
        %217 = vmatpush.msra.mxu0 0.0
        %218 = vmatpush.msra.mxu0 0.0
        %219 = vmatpush.msra.mxu0 0.0
        %220 = vmatpush.msra.mxu0 0.0
        %221 = vmatpush.msra.mxu0 0.0
        %222 = vmatpush.msra.mxu0 0.0
        %223 = vmatpush.msra.mxu0 0.0
        %224 = vmatpush.msra.mxu0 0.0
        %225 = vmatpush.msra.mxu0 %v203
        %226 = vmatmul.f32.gmra.mxu0 %v208
        %v227 = vpop.f32.mrf.mxu0
        %v228 = vadd.f32 0.0, %v227
        %229 = vdwg.mxu0
        %230 = vmatpush.msra.mxu0 0.0
        %231 = vmatpush.msra.mxu0 0.0
        %232 = vmatpush.msra.mxu0 0.0
        %233 = vmatpush.msra.mxu0 0.0
        %234 = vmatpush.msra.mxu0 0.0
        %235 = vmatpush.msra.mxu0 0.0
        %236 = vmatpush.msra.mxu0 0.0
        %237 = vmatpush.msra.mxu0 0.0
        %238 = vmatpush.msra.mxu0 0.0
        %239 = vmatpush.msra.mxu0 0.0
        %240 = vmatpush.msra.mxu0 0.0
        %241 = vmatpush.msra.mxu0 0.0
        %242 = vmatpush.msra.mxu0 0.0
        %243 = vmatpush.msra.mxu0 0.0
        %244 = vmatpush.msra.mxu0 0.0
        %245 = vmatpush.msra.mxu0 %v204
        %246 = vmatmul.f32.gmra.mxu0 %v208
        %v247 = vpop.f32.mrf.mxu0
        %v248 = vadd.f32 0.0, %v247
        %249 = vdwg.mxu0
        %v250 = vld [vmem:[#allocation2] sm:$0x1]
        %vm251 = vcmask 1040384
        %v252 = vsel %vm251, %v228, -inf
        %v253 = vsel %vm251, %v248, -inf
        %v254 = vmax.f32 %v252, %v253
        %255 = vmax.xlane.f32.xlu0 %v254
        %v256 = vpop.xlane.xlu0 %255
        %v257 = vmax.f32 %v250, %v256
        %v258 = vsub.f32 %v250, %v257
        %v259 = vmul.f32 %v258, 1.442695
        %v260 = vpow.pop %v259
        %262 = vset.pattern.permute.xlu0 0
        %263 = vperm.xlu0 %262, %v257
        %v264 = vpop.permute.xlu0 %263
        %v266 = vperm.slane %v264, 0
        %v267 = vsub.f32 %v228, %v266
        %v268 = vsub.f32 %v248, %v266
        %v269 = vmul.f32 %v267, 1.442695
        %v270 = vpow.pop %v269
        %v271 = vmul.f32 %v268, 1.442695
        %v272 = vpow.pop %v271
        %v273 = vld [vmem:[#allocation3] sm:$0x1]
        %v274 = vmul.f32 %v260, %v273
        %v275 = vsel %vm251, %v270, 0.0
        %v276 = vsel %vm251, %v272, 0.0
        %v277 = vadd.f32 %v275, %v276
        %278 = vadd.xlane.f32.xlu0 %v277
        %v279 = vpop.xlane.xlu0 %278
        %v280 = vadd.f32 %v274, %v279
        %vm281 = vcmask 0
        %282 = vst.msk [vmem:[#allocation3] sm:$0x1] %vm281, %v280
        %v283 = vld [vmem:[#allocation4] sm:$0xff]
        %v285 = vperm.slane %v260, 0
        %v287 = vmul.f32 %v285, %v283
        %v288 = vperm.slane %v270, 0
        %v289 = vperm.slane %v272, 0
        %v290 = vmul.f32 %v203, %v288
        %v291 = vmul.f32 %v204, %v289
        %v292 = vadd.f32 %v290, %v291
        %293 = vadd.xlane.f32.xlu0 %v292
        %v294 = vpop.xlane.xlu0 %293
        %v295 = vadd.f32 %v287, %v294
        %vm296 = vcmask 7168
        %297 = vst.msk [vmem:[#allocation4] sm:$0xff] %vm296, %v295
        %298 = vst.msk [vmem:[#allocation2] sm:$0x1] %vm281, %v257
        // Predicated region
        $region41: #{tpu_custom_call.1} parent=27 // pred_check
          %p299 = pneg %p194
        $region42: #{tpu_custom_call.1} parent=27 // pred_check_branch
          %301 = sbr.rel (%p299) target = $region44
        $region43: #{tpu_custom_call.1} parent=27 // pred_region
          %v302 = vld [vmem:[#allocation4] sm:$0xff]
          %v303 = vld [vmem:[#allocation3] sm:$0x1]
          %v305 = vperm.slane %v303, 0
          %v307 = vrcp.pop %v305
          %v308 = vmul.f32 %v305, %v307
          %v309 = vsub.f32 1.0, %v308
          %v310 = vmul.f32 %v307, %v309
          %v311 = vadd.f32 %v307, %v310
          %vm312 = vweird.f32 %v305
          %vm313 = vweird.f32 %v307
          %vm314 = vmor %vm312, %vm313
          %v315 = vsel %vm314, %v307, %v311
          %v316 = vand.u32 2147483647, %v305
          %vm317 = vcmp.eq.f32.partialorder %v316, 8.507059e+37
          %v318 = vand.u32 %v305, 2147483648
          %v319 = vor.u32 1.1754944e-38, %v318
          %v320 = vsel %vm317, %v319, %v315
          %v321 = vmul.f32 %v302, %v320
          %322 = vst.msk [vmem:[%s193] sm:$0xff] %vm296, %v321
        $region44: #{tpu_custom_call.1} parent=27 // pred_fallthru
          _
        %p323 = scmp.lt.s32.totalorder %s21, 1
        %s324 = scalar_select %p323, %s21, 1
        %s325 = smul.addr %s324, 8
        %s326 = scalar_lea.vmem %s2, %s325
        // Predicated region
        $region45: #{tpu_custom_call.1} parent=27 // pred_check
          %p327 = pneg %p96
        $region46: #{tpu_custom_call.1} parent=27 // pred_check_branch
          %329 = sbr.rel (%p327) target = $region48
        $region47: #{tpu_custom_call.1} parent=27 // pred_region
          _
        $region48: #{tpu_custom_call.1} parent=27 // pred_fallthru
          _
      $region28: #{tpu_custom_call.1} parent=5 // pred_fallthru
        _
      %p330 = scmp.le.s32.totalorder 2, %s12
      // Predicated region
      $region49: #{tpu_custom_call.1} parent=5 // pred_check
        %p331 = pneg %p330
      $region50: #{tpu_custom_call.1} parent=5 // pred_check_branch
        %333 = sbr.rel (%p331) target = $region52
      $region51: #{tpu_custom_call.1} parent=5 // pred_region
        %s334 = ssub.s32 %s12, 2
        // Predicated region
        $region53: #{tpu_custom_call.1} parent=51 // pred_check
          %p335 = pneg %p102
        $region54: #{tpu_custom_call.1} parent=51 // pred_check_branch
          %337 = sbr.rel (%p335) target = $region56
        $region55: #{tpu_custom_call.1} parent=51 // pred_region
          %p338 = scmp.lt.s32.totalorder %s23, 1
          %s339 = scalar_select %p338, %s23, 1
          %s340 = smul.addr %s339, 8
          %s341 = scalar_lea.vmem %s2, %s340
        $region56: #{tpu_custom_call.1} parent=51 // pred_fallthru
          _
      $region52: #{tpu_custom_call.1} parent=5 // pred_fallthru
        _
    $region6: #{tpu_custom_call.1} parent=1 // loop_footer
      %s16 = sadd.s32 1, %s12
    $region7: #{tpu_custom_call.1} parent=1 // loop_footer_branch
      %11 = sbr.rel target = $region3
    $region8: #{tpu_custom_call.1} parent=1 // loop_exit
      _
    %342 = vsyncpa [#allocation6], 1
    %s343 = scalar_lea.sflag [#allocation6], 1
    %344 = vsyncpa %s343, 1
    %345 = vsyncpa [#allocation8], 1

</llo_original>
